<compile_context>
chip_gen: v6e
topology: v6e:2x2x1
jax: 0.10.0
libtpu: 0.0.40
codegen_flags: <defaults>
</compile_context>

<pallas_src>
import jax
import jax.numpy as jnp
from jax.experimental import pallas as pl
from jax.experimental.pallas import tpu as pltpu

FEAT_PAD = 8        # sublane padding for the 5-wide hidden feature dim
LANE_PAD = 128      # lane padding for the 2-wide output row
DEFAULT_TILE_K = 8192


def _round_up(n, m):
    return ((n + m - 1) // m) * m


def _padded_d(input_size, tile_k):
    """Pad flattened input dim so it is lane-aligned and tileable by tile_k."""
    dp = _round_up(max(int(input_size), 1), 128)
    if dp > tile_k:
        dp = _round_up(dp, tile_k)
    return dp


def _mlp_kernel(x_ref, w1_ref, b1_ref, weff_ref, beff_ref, out_ref, acc_ref):
    """Tiled layer-1 (VPU multiply + XLU lane-reduce) + folded 5x2 affine tail.

    Grid axis 0 tiles the flattened input dimension D (reduction axis).
      x_ref    : (1, TK)   slice of the flattened input
      w1_ref   : (8, TK)   slice of layer-1 weights (out-features on sublanes)
      b1_ref   : (8, 1)    layer-1 bias (5 padded to 8)
      weff_ref : (8, 128)  folded middle+output weights (5x2, zero-padded)
      beff_ref : (1, 128)  folded bias (2, zero-padded)
      out_ref  : (1, 128)  lane-dense output row (cols 0..1 are real)
      acc_ref  : (8, 1)    VMEM scratch accumulator for h1
    """
    k = pl.program_id(0)

    @pl.when(k == 0)
    def _():
        acc_ref[...] = b1_ref[...]          # start accumulation from the bias

    # layer-1 partial: broadcast multiply (VPU) + lane reduce (XLU), both
    # hidden under the w1 DMA which dominates this memory-bound kernel.
    prod = w1_ref[...] * x_ref[...]                        # (8, TK)
    acc_ref[...] += jnp.sum(prod, axis=1, keepdims=True)   # (8, 1)

    @pl.when(k == pl.num_programs(0) - 1)
    def _():
        h1 = acc_ref[...]                                  # (8, 1)
        # folded tail: (8,1)*(8,128) broadcast + sublane reduce -> (1,128)
        out_ref[...] = (jnp.sum(h1 * weff_ref[...], axis=0, keepdims=True)
                        + beff_ref[...])


def test_net_forward(x, padded_params, *, tile_k=DEFAULT_TILE_K):
    """x: any-shape f32 array (flattened inside, like x.view(-1)). Returns (2,)."""
    w1p, b1p, weffp, beffp = padded_params
    dp = w1p.shape[1]
    tk = min(tile_k, dp)
    assert tk % 128 == 0 or tk == dp
    assert dp % tk == 0, (dp, tk)

    xf = x.reshape(-1).astype(jnp.float32)
    xp = jnp.zeros((1, dp), jnp.float32).at[0, :xf.size].set(xf)

    grid = (dp // tk,)
    cost = pl.CostEstimate(
        flops=2 * dp * FEAT_PAD,
        transcendentals=0,
        bytes_accessed=(dp * (FEAT_PAD + 1) + FEAT_PAD * LANE_PAD) * 4,
    )
    out_padded = pl.pallas_call(
        _mlp_kernel,
        out_shape=jax.ShapeDtypeStruct((1, LANE_PAD), jnp.float32),
        grid_spec=pltpu.PrefetchScalarGridSpec(
            num_scalar_prefetch=0,
            grid=grid,
            in_specs=[
                pl.BlockSpec((1, tk), lambda k: (0, k)),                 # x
                pl.BlockSpec((FEAT_PAD, tk), lambda k: (0, k)),          # w1
                pl.BlockSpec((FEAT_PAD, 1), lambda k: (0, 0)),           # b1
                pl.BlockSpec((FEAT_PAD, LANE_PAD), lambda k: (0, 0)),    # W_eff
                pl.BlockSpec((1, LANE_PAD), lambda k: (0, 0)),           # b_eff
            ],
            out_specs=pl.BlockSpec((1, LANE_PAD), lambda k: (0, 0)),
            scratch_shapes=[pltpu.VMEM((FEAT_PAD, 1), jnp.float32)],
        ),
        compiler_params=pltpu.CompilerParams(
            dimension_semantics=("arbitrary",)),   # reduction over D
        cost_estimate=cost,
    )(xp, w1p, b1p, weffp, beffp)
    return out_padded[0, :2]


def init_params(key, num_layers, input_size):
    """Deterministic init mimicking nn.Linear (uniform +-1/sqrt(fan_in)).

    Weights are stored transposed as (in_features, out_features)."""
    keys = jax.random.split(key, 6)

    def uinit(k, shape, fan_in):
        bound = 1.0 / jnp.sqrt(jnp.float32(fan_in))
        return jax.random.uniform(k, shape, jnp.float32, -bound, bound)

    w1 = uinit(keys[0], (input_size, 5), input_size)
    b1 = uinit(keys[1], (5,), input_size)
    wm = uinit(keys[2], (num_layers, 5, 5), 5)
    bm = uinit(keys[3], (num_layers, 5), 5)
    wo = uinit(keys[4], (5, 2), 5)
    bo = uinit(keys[5], (2,), 5)
    return (w1, b1, wm, bm, wo, bo)


def prepare_params(raw_params, num_layers, *, tile_k=DEFAULT_TILE_K):
    """Fold the activation-free middle/output layers and pad for the kernel."""
    w1, b1, wm, bm, wo, bo = raw_params
    input_size = w1.shape[0]

    # Fold: out = h1 @ A + c  (exact — the chain has no nonlinearities)
    a = jnp.eye(5, dtype=jnp.float32)
    c = jnp.zeros((5,), jnp.float32)
    for l in range(num_layers):
        a = a @ wm[l]
        c = c @ wm[l] + bm[l]
    a = a @ wo                 # (5, 2)
    c = c @ wo + bo            # (2,)

    dp = _padded_d(input_size, tile_k)

    # Layer-1 weight stored (out=8 sublanes, in=dp lanes); zero padding is inert.
    w1p = jnp.zeros((FEAT_PAD, dp), jnp.float32).at[:5, :input_size].set(w1.T)
    b1p = jnp.zeros((FEAT_PAD, 1), jnp.float32).at[:5, 0].set(b1)
    weffp = jnp.zeros((FEAT_PAD, LANE_PAD), jnp.float32).at[:5, :2].set(a)
    beffp = jnp.zeros((1, LANE_PAD), jnp.float32).at[0, :2].set(c)
    return (w1p, b1p, weffp, beffp)


def reference_forward(x, raw_params, num_layers):
    """Pure-JAX reference matching PyTorch semantics exactly."""
    w1, b1, wm, bm, wo, bo = raw_params
    h = x.reshape(-1).astype(jnp.float32)
    h = h @ w1 + b1
    for l in range(num_layers):
        h = h @ wm[l] + bm[l]
    return h @ wo + bo


if __name__ == "__main__":
    num_layers = 3

    # Case 1: small input, single reduction tile (D = 64 -> padded to 128).
    x_shape = (2, 4, 8)
    input_size = 2 * 4 * 8
    key = jax.random.PRNGKey(0)
    kx, kp = jax.random.split(key)
    x = jax.random.normal(kx, x_shape, jnp.float32)
    raw_params = init_params(kp, num_layers, input_size)
    padded_params = prepare_params(raw_params, num_layers)

    out = jax.block_until_ready(test_net_forward(x, padded_params))
    ref = reference_forward(x, raw_params, num_layers)
    assert out.shape == (2,), out.shape
    assert jnp.allclose(out, ref, atol=1e-4, rtol=1e-4), (out, ref)

    # Case 2: larger input exercising the multi-tile pipelined reduction grid
    # (D = 1024 -> 4 tiles of 256).
    x_shape2 = (2, 4, 128)
    input_size2 = 2 * 4 * 128
    kx2, kp2 = jax.random.split(jax.random.PRNGKey(1))
    x2 = jax.random.normal(kx2, x_shape2, jnp.float32)
    raw2 = init_params(kp2, num_layers, input_size2)
    padded2 = prepare_params(raw2, num_layers, tile_k=256)
    out2 = jax.block_until_ready(test_net_forward(x2, padded2, tile_k=256))
    ref2 = reference_forward(x2, raw2, num_layers)
    assert jnp.allclose(out2, ref2, atol=1e-4, rtol=1e-4), (out2, ref2)

    print("KERNEL_OK")
</pallas_src>

<mosaic_0001>
module attributes {stable_mosaic.version = 11 : i64} {
  func.func @_mlp_kernel(%arg0: i32, %arg1: memref<1x128xf32, #tpu.memory_space<vmem>>, %arg2: memref<8x128xf32, #tpu.memory_space<vmem>>, %arg3: memref<8x1xf32, #tpu.memory_space<vmem>>, %arg4: memref<8x128xf32, #tpu.memory_space<vmem>>, %arg5: memref<1x128xf32, #tpu.memory_space<vmem>>, %arg6: memref<1x128xf32, #tpu.memory_space<vmem>>, %arg7: memref<8x1xf32, #tpu.memory_space<vmem>>) attributes {dimension_semantics = [#tpu.dimension_semantics<arbitrary>], iteration_bounds = array<i64: 1>, scalar_prefetch = 0 : i64, scratch_operands = 1 : i64, tpu.core_type = #tpu.core_type<tc>, window_params = [{transform_indices = @transform_0, window_bounds = array<i64: 1, 128>}, {transform_indices = @transform_1, window_bounds = array<i64: 8, 128>}, {pipeline_mode = #tpu.pipeline_mode<synchronous>, transform_indices = @transform_2, window_bounds = array<i64: 8, 1>}, {pipeline_mode = #tpu.pipeline_mode<synchronous>, transform_indices = @transform_3, window_bounds = array<i64: 8, 128>}, {pipeline_mode = #tpu.pipeline_mode<synchronous>, transform_indices = @transform_4, window_bounds = array<i64: 1, 128>}, {pipeline_mode = #tpu.pipeline_mode<synchronous>, transform_indices = @transform_5, window_bounds = array<i64: 1, 128>}]} {
    %c0_i32 = arith.constant 0 : i32
    %0 = arith.cmpi eq, %arg0, %c0_i32 : i32
    %1 = arith.extui %0 : i1 to i32
    %c0_i32_0 = arith.constant 0 : i32
    %2 = arith.cmpi ne, %1, %c0_i32_0 : i32
    scf.if %2 {
      %c0_10 = arith.constant 0 : index
      %c0_11 = arith.constant 0 : index
      %15 = vector.load %arg3[%c0_10, %c0_11] : memref<8x1xf32, #tpu.memory_space<vmem>>, vector<8x1xf32>
      %c0_12 = arith.constant 0 : index
      %c0_13 = arith.constant 0 : index
      %16 = vector.load %arg7[%c0_12, %c0_13] : memref<8x1xf32, #tpu.memory_space<vmem>>, vector<8x1xf32>
      tpu.vector_store %arg7[%c0_12, %c0_13], %15 {strides = array<i32>} : memref<8x1xf32, #tpu.memory_space<vmem>>, vector<8x1xf32>,
    } else {
    }
    %c0 = arith.constant 0 : index
    %c0_1 = arith.constant 0 : index
    %3 = vector.load %arg2[%c0, %c0_1] : memref<8x128xf32, #tpu.memory_space<vmem>>, vector<8x128xf32>
    %c0_2 = arith.constant 0 : index
    %c0_3 = arith.constant 0 : index
    %4 = vector.load %arg1[%c0_2, %c0_3] : memref<1x128xf32, #tpu.memory_space<vmem>>, vector<1x128xf32>
    %5 = vector.broadcast %4 : vector<1x128xf32> to vector<8x128xf32>
    %6 = arith.mulf %3, %5 : vector<8x128xf32>
    %c0_4 = arith.constant 0 : index
    %c0_5 = arith.constant 0 : index
    %7 = vector.load %arg7[%c0_4, %c0_5] : memref<8x1xf32, #tpu.memory_space<vmem>>, vector<8x1xf32>
    %cst = arith.constant dense<0.000000e+00> : vector<8xf32>
    %8 = vector.multi_reduction <add>, %6, %cst [1] : vector<8x128xf32> to vector<8xf32>
    %9 = vector.shape_cast %8 : vector<8xf32> to vector<8x1xf32>
    %10 = arith.addf %7, %9 : vector<8x1xf32>
    %c0_6 = arith.constant 0 : index
    %c0_7 = arith.constant 0 : index
    %11 = vector.load %arg7[%c0_6, %c0_7] : memref<8x1xf32, #tpu.memory_space<vmem>>, vector<8x1xf32>
    tpu.vector_store %arg7[%c0_6, %c0_7], %10 {strides = array<i32>} : memref<8x1xf32, #tpu.memory_space<vmem>>, vector<8x1xf32>,
    %c0_i32_8 = arith.constant 0 : i32
    %12 = arith.cmpi eq, %arg0, %c0_i32_8 : i32
    %13 = arith.extui %12 : i1 to i32
    %c0_i32_9 = arith.constant 0 : i32
    %14 = arith.cmpi ne, %13, %c0_i32_9 : i32
    scf.if %14 {
      %c0_10 = arith.constant 0 : index
      %c0_11 = arith.constant 0 : index
      %15 = vector.load %arg7[%c0_10, %c0_11] : memref<8x1xf32, #tpu.memory_space<vmem>>, vector<8x1xf32>
      %c0_12 = arith.constant 0 : index
      %c0_13 = arith.constant 0 : index
      %16 = vector.load %arg4[%c0_12, %c0_13] : memref<8x128xf32, #tpu.memory_space<vmem>>, vector<8x128xf32>
      %17 = vector.broadcast %15 : vector<8x1xf32> to vector<8x128xf32>
      %18 = arith.mulf %17, %16 : vector<8x128xf32>
      %cst_14 = arith.constant dense<0.000000e+00> : vector<128xf32>
      %19 = vector.multi_reduction <add>, %18, %cst_14 [0] : vector<8x128xf32> to vector<128xf32>
      %20 = vector.shape_cast %19 : vector<128xf32> to vector<1x128xf32>
      %c0_15 = arith.constant 0 : index
      %c0_16 = arith.constant 0 : index
      %21 = vector.load %arg5[%c0_15, %c0_16] : memref<1x128xf32, #tpu.memory_space<vmem>>, vector<1x128xf32>
      %22 = arith.addf %20, %21 : vector<1x128xf32>
      %c0_17 = arith.constant 0 : index
      %c0_18 = arith.constant 0 : index
      %23 = vector.load %arg6[%c0_17, %c0_18] : memref<1x128xf32, #tpu.memory_space<vmem>>, vector<1x128xf32>
      tpu.vector_store %arg6[%c0_17, %c0_18], %22 {strides = array<i32>} : memref<1x128xf32, #tpu.memory_space<vmem>>, vector<1x128xf32>,
    } else {
    }
    return
  }
  func.func @transform_0(%arg0: i32) -> (i32, i32) {
    %c0_i32 = arith.constant 0 : i32
    %c0_i32_0 = arith.constant 0 : i32
    return %c0_i32, %arg0 : i32, i32
  }
  func.func @transform_1(%arg0: i32) -> (i32, i32) {
    %c0_i32 = arith.constant 0 : i32
    %c0_i32_0 = arith.constant 0 : i32
    return %c0_i32, %arg0 : i32, i32
  }
  func.func @transform_2(%arg0: i32) -> (i32, i32) {
    %c0_i32 = arith.constant 0 : i32
    %c0_i32_0 = arith.constant 0 : i32
    %c0_i32_1 = arith.constant 0 : i32
    return %c0_i32, %c0_i32_0 : i32, i32
  }
  func.func @transform_3(%arg0: i32) -> (i32, i32) {
    %c0_i32 = arith.constant 0 : i32
    %c0_i32_0 = arith.constant 0 : i32
    %c0_i32_1 = arith.constant 0 : i32
    return %c0_i32, %c0_i32_0 : i32, i32
  }
  func.func @transform_4(%arg0: i32) -> (i32, i32) {
    %c0_i32 = arith.constant 0 : i32
    %c0_i32_0 = arith.constant 0 : i32
    %c0_i32_1 = arith.constant 0 : i32
    return %c0_i32, %c0_i32_0 : i32, i32
  }
  func.func @transform_5(%arg0: i32) -> (i32, i32) {
    %c0_i32 = arith.constant 0 : i32
    %c0_i32_0 = arith.constant 0 : i32
    %c0_i32_1 = arith.constant 0 : i32
    return %c0_i32, %c0_i32_0 : i32, i32
  }
}

</mosaic_0001>

<llo_original>
// kernel: tpu_custom_call.1
$region0: #{tpu_custom_call.1}
  #allocation0 [shape = 'u32[]', space=smem, size = 0x4, offset = 0x4, fixed_abs, tag = 'smem constant byte address 0x4 - core index']
  #allocation1 [shape = 'u32[144,128]{1,0:T(1,128)}', space=vmem, size = 0x12000, scoped, tag = 'internal scratch']
  #allocation2 [shape = 'f32[8,1]{1,0:T(8,128)}', space=vmem, size = 0x1000, scoped, tag = 'scratch operand']
  %s0 = inlined_call_operand.vmem [shape: f32[1,128], index: 0, kind: input, shape index: {}]
  %s1 = inlined_call_operand.vmem [shape: f32[8,128], index: 1, kind: input, shape index: {}]
  %s2 = inlined_call_operand.vmem [shape: f32[8,1], index: 2, kind: input, shape index: {}]
  %s3 = inlined_call_operand.hbm [shape: f32[8,128], index: 3, kind: input, shape index: {}]
  %s4 = inlined_call_operand.vmem [shape: f32[1,128], index: 4, kind: input, shape index: {}]
  %s5 = inlined_call_operand.hbm [shape: f32[1,128], index: 5, kind: output, shape index: {}]
  %s6 = sld [smem:[#allocation0]]
  $region42: #{tpu_custom_call.1} parent=0
    _
  %s8 = ssub.s32 1, %s6
  %s9 = scalar_select 0, %s8, %s6
  $region1: #{tpu_custom_call.1} parent=0
    #allocation3 [shape = 'u8[4096]{0}', space=vmem, size = 0x1000, scoped, tag = 'input window, operand 3, single buffered']
    #allocation4 [shape = 's32[1]{0}', space=sflag, size = 0x4, scoped, tag = 'scoped memory for tpu_custom_call.1']
    #allocation5 [shape = 's32[1]{0}', space=sflag, size = 0x4, scoped, tag = 'scoped memory for tpu_custom_call.1']
    #allocation6 [shape = 'u8[512]{0}', space=vmem, size = 0x400, scoped, tag = 'output window, operand 0, single buffered']
    %10 = vsyncpa [#allocation4], 0
    %11 = vsyncpa [#allocation5], 0
    // Predicated region
    $region2: #{tpu_custom_call.1} parent=1 // pred_check
      _
    $region3: #{tpu_custom_call.1} parent=1 // pred_check_branch
      %13 = sbr.rel (0) target = $region5
    $region4: #{tpu_custom_call.1} parent=1 // pred_region
      _
    $region5: #{tpu_custom_call.1} parent=1 // pred_fallthru
      _
    // Predicated region
    $region6: #{tpu_custom_call.1} parent=1 // pred_check
      _
    $region7: #{tpu_custom_call.1} parent=1 // pred_check_branch
      %15 = sbr.rel (0) target = $region9
    $region8: #{tpu_custom_call.1} parent=1 // pred_region
      _
    $region9: #{tpu_custom_call.1} parent=1 // pred_fallthru
      _
    // Predicated region
    $region10: #{tpu_custom_call.1} parent=1 // pred_check
      _
    $region11: #{tpu_custom_call.1} parent=1 // pred_check_branch
      %17 = sbr.rel (0) target = $region13
    $region12: #{tpu_custom_call.1} parent=1 // pred_region
      _
    $region13: #{tpu_custom_call.1} parent=1 // pred_fallthru
      _
    // Predicated region
    $region14: #{tpu_custom_call.1} parent=1 // pred_check
      _
    $region15: #{tpu_custom_call.1} parent=1 // pred_check_branch
      %19 = sbr.rel (0) target = $region17
    $region16: #{tpu_custom_call.1} parent=1 // pred_region
      %s21 = ssub.s32 128, 128
      %22 = vsyncadd [#allocation4], %s21
      %s24 = sshll.u32 [#allocation3], 4
      %s25 = int_to_ptr.vmem [resolvable:$true] %s24
      %27 = dma.hbm_to_vmem [thread:$0]  %s3, 128, %s25, [#allocation4]
    $region17: #{tpu_custom_call.1} parent=1 // pred_fallthru
      _
    // Predicated region
    $region18: #{tpu_custom_call.1} parent=1 // pred_check
      _
    $region19: #{tpu_custom_call.1} parent=1 // pred_check_branch
      %29 = sbr.rel (0) target = $region21
    $region20: #{tpu_custom_call.1} parent=1 // pred_region
      _
    $region21: #{tpu_custom_call.1} parent=1 // pred_fallthru
      _
    // Predicated region
    $region22: #{tpu_custom_call.1} parent=1 // pred_check
      _
    $region23: #{tpu_custom_call.1} parent=1 // pred_check_branch
      %31 = sbr.rel (0) target = $region25
    $region24: #{tpu_custom_call.1} parent=1 // pred_region
      %32 = dma.done [#allocation4], 128
    $region25: #{tpu_custom_call.1} parent=1 // pred_fallthru
      _
    %p33 = scmp.eq.s32.totalorder 0, 0
    // Predicated region
    $region26: #{tpu_custom_call.1} parent=1 // pred_check
      %p34 = pneg %p33
    $region27: #{tpu_custom_call.1} parent=1 // pred_check_branch
      %36 = sbr.rel (%p34) target = $region29
    $region28: #{tpu_custom_call.1} parent=1 // pred_region
      %v37 = vld [vmem:[%s2] sm:$0xff]
      %vm38 = vcmask 7168
      %39 = vst.msk [vmem:[#allocation2] sm:$0xff] %vm38, %v37
    $region29: #{tpu_custom_call.1} parent=1 // pred_fallthru
      _
    %v40 = vld [vmem:[%s1] sm:$0xff]
    %v41 = vld [vmem:[%s0] sm:$0x1]
    %v43 = vlaneseq
    %v44 = vshrl.u32 %v43, 7
    %v45 = vsub.s32 0, %v44
    %v46 = vrot.slane %v41, %v45
    %v48 = vmul.f32 %v40, %v46
    %v49 = vld [vmem:[#allocation2] sm:$0xff]
    %50 = vadd.xlane.f32.xlu0 %v48
    %v51 = vpop.xlane.xlu0 %50
    %v52 = vadd.f32 %v49, %v51
    %vm53 = vcmask 7168
    %54 = vst.msk [vmem:[#allocation2] sm:$0xff] %vm53, %v52
    // Predicated region
    $region30: #{tpu_custom_call.1} parent=1 // pred_check
      %p55 = pneg %p33
    $region31: #{tpu_custom_call.1} parent=1 // pred_check_branch
      %57 = sbr.rel (%p55) target = $region33
    $region32: #{tpu_custom_call.1} parent=1 // pred_region
      %v58 = vld [vmem:[#allocation2] sm:$0xff]
      %v59 = vld [vmem:[#allocation3] sm:$0xff]
      %61 = vset.pattern.permute.xlu0 0
      %62 = vperm.xlu0 %61, %v58
      %v63 = vpop.permute.xlu0 %62
      %v65 = vmul.f32 %v63, %v59
      %v66 = vrot.slane %v65, 4
      %v67 = vadd.f32 %v65, %v66
      %v68 = vrot.slane %v67, 2
      %v69 = vadd.f32 %v67, %v68
      %v70 = vrot.slane %v69, 1
      %v71 = vadd.f32 %v69, %v70
      %v72 = vld [vmem:[%s4] sm:$0x1]
      %v73 = vadd.f32 %v71, %v72
      %74 = vst [vmem:[#allocation6] sm:$0x1] %v73
    $region33: #{tpu_custom_call.1} parent=1 // pred_fallthru
      _
    // Predicated region
    $region34: #{tpu_custom_call.1} parent=1 // pred_check
      _
    $region35: #{tpu_custom_call.1} parent=1 // pred_check_branch
      %76 = sbr.rel (0) target = $region37
    $region36: #{tpu_custom_call.1} parent=1 // pred_region
      %s78 = ssub.s32 16, 16
      %79 = vsyncadd [#allocation5], %s78
      %s81 = sshll.u32 [#allocation6], 4
      %s82 = int_to_ptr.vmem [resolvable:$true] %s81
      %84 = dma.vmem_to_hbm [thread:$0]  %s82, 16, %s5, [#allocation5]
    $region37: #{tpu_custom_call.1} parent=1 // pred_fallthru
      _
    // Predicated region
    $region38: #{tpu_custom_call.1} parent=1 // pred_check
      _
    $region39: #{tpu_custom_call.1} parent=1 // pred_check_branch
      %86 = sbr.rel (0) target = $region41
    $region40: #{tpu_custom_call.1} parent=1 // pred_region
      %87 = dma.done [#allocation5], 16
    $region41: #{tpu_custom_call.1} parent=1 // pred_fallthru
      _
    %88 = vsyncpa [#allocation4], 1
    %89 = vsyncpa [#allocation5], 1

</llo_original>
